<compile_context>
chip_gen: v5e
topology: v5e:2x2
jax: 0.10.0
libtpu: 0.0.40
codegen_flags: <defaults>
</compile_context>

<pallas_src>
import functools

import jax
import jax.numpy as jnp
from jax.experimental import pallas as pl
from jax.experimental.pallas import tpu as pltpu

BN_EPS = 1e-5
LEAKY_SLOPE = 0.1

# VMEM sizing — conservative so the same numbers are valid on v5e/v6e (128 MiB
# physical VMEM) and v7x (64 MiB physical VMEM).
_VMEM_LIMIT_BYTES = 48 * 1024 * 1024   # explicit scoped-VMEM limit per call
_TILE_VMEM_BUDGET = 12 * 1024 * 1024   # double-buffered per-tile working set
_FUSE_SLAB_LIMIT = 16 * 1024 * 1024    # max f32 conv slab held resident (fused path)
_MAX_TM = 4096                         # lane-tile cap (review: 2048-4096)


def _round_up(x, m):
    return (x + m - 1) // m * m


# ----------------------------------------------------------------------------
# Fused single-call kernel (conv + batch stats + BN + LeakyReLU)
# ----------------------------------------------------------------------------
def _fused_kernel(patch_ref, w_ref, g_ref, b_ref, o_ref,
                  conv_ref, sum_ref, sq_ref, scale_ref, shift_ref, *, inv_m):
    """grid = (2, n_tiles); phase 0 = conv+stats, phase 1 = normalize+LeakyReLU."""
    p = pl.program_id(0)
    i = pl.program_id(1)
    tm = o_ref.shape[1]

    @pl.when(p == 0)
    def _():
        @pl.when(i == 0)
        def _():
            sum_ref[...] = jnp.zeros_like(sum_ref)
            sq_ref[...] = jnp.zeros_like(sq_ref)

        # (C8, Kp) @ (Kp, TM) -> (C8, TM), f32 accumulation on the MXU.
        conv = jnp.dot(w_ref[...], patch_ref[...],
                       preferred_element_type=jnp.float32)
        start = pl.multiple_of(i * tm, 128)
        conv_ref[:, pl.ds(start, tm)] = conv        # conv stays resident in VMEM

        # Lane-wise stats accumulation (pure VPU adds, no per-tile XLU reduce);
        # the single 128-lane cross-lane reduce happens once in phase 1.
        s = sum_ref[...]
        q = sq_ref[...]
        for j in range(tm // 128):
            blk = conv[:, j * 128:(j + 1) * 128]
            s = s + blk
            q = q + blk * blk
        sum_ref[...] = s
        sq_ref[...] = q

    @pl.when(p == 1)
    def _():
        @pl.when(i == 0)
        def _():
            total = jnp.sum(sum_ref[...], axis=1, keepdims=True)       # (C8, 1)
            total_sq = jnp.sum(sq_ref[...], axis=1, keepdims=True)
            mean = total * inv_m
            var = jnp.maximum(total_sq * inv_m - mean * mean, 0.0)     # clamp cancellation
            inv_std = jax.lax.rsqrt(var + BN_EPS)
            scale = g_ref[...][:, :1] * inv_std
            shift = b_ref[...][:, :1] - mean * scale
            scale_ref[...] = jnp.broadcast_to(scale, scale_ref.shape)
            shift_ref[...] = jnp.broadcast_to(shift, shift_ref.shape)

        start = pl.multiple_of(i * tm, 128)
        conv = conv_ref[:, pl.ds(start, tm)]
        y = conv * scale_ref[...][:, :1] + shift_ref[...][:, :1]       # lane-bcast FMA
        o_ref[...] = jnp.where(y >= 0, y, LEAKY_SLOPE * y)


# ----------------------------------------------------------------------------
# Spill fallback kernels (two calls: conv+stats, then streaming normalize)
# ----------------------------------------------------------------------------
def _conv_stats_kernel(patch_ref, w_ref, conv_ref, sum_ref, sq_ref):
    """Pass 1: conv tile (lane-dense f32 output) + lane-wise per-channel stats."""
    @pl.when(pl.program_id(0) == 0)
    def _():
        sum_ref[...] = jnp.zeros_like(sum_ref)
        sq_ref[...] = jnp.zeros_like(sq_ref)

    conv = jnp.dot(w_ref[...], patch_ref[...], preferred_element_type=jnp.float32)
    conv_ref[...] = conv

    s = sum_ref[...]
    q = sq_ref[...]
    for j in range(conv.shape[1] // 128):
        blk = conv[:, j * 128:(j + 1) * 128]
        s = s + blk
        q = q + blk * blk
    sum_ref[...] = s
    sq_ref[...] = q


def _norm_kernel(conv_ref, scale_ref, shift_ref, o_ref):
    """Pass 2: pure streaming y = conv*scale + shift, LeakyReLU."""
    y = conv_ref[...] * scale_ref[...][:, :1] + shift_ref[...][:, :1]
    o_ref[...] = jnp.where(y >= 0, y, LEAKY_SLOPE * y)


# ----------------------------------------------------------------------------
# Wrapper
# ----------------------------------------------------------------------------
def _im2col_km(x, kh, kw, stride, padding, dilation):
    """x: (N, C, H, W) -> patches (K = C*KH*KW, M = N*OH*OW), plus (OH, OW).

    K is ordered (C, KH, KW), matching weight.reshape(C_out, C*KH*KW).
    M is ordered (N, OH, OW).
    """
    n, c, h, w = x.shape
    xp = jnp.pad(x, ((0, 0), (0, 0), (padding, padding), (padding, padding)))
    oh = (h + 2 * padding - dilation * (kh - 1) - 1) // stride + 1
    ow = (w + 2 * padding - dilation * (kw - 1) - 1) // stride + 1

    cols = []
    for i in range(kh):
        for j in range(kw):
            hi = i * dilation
            wj = j * dilation
            cols.append(
                xp[:, :, hi:hi + stride * (oh - 1) + 1:stride,
                         wj:wj + stride * (ow - 1) + 1:stride])
    pat = jnp.stack(cols, axis=2)                          # (N, C, KH*KW, OH, OW)
    pat = pat.transpose(1, 2, 0, 3, 4).reshape(c * kh * kw, n * oh * ow)
    return pat, oh, ow


@functools.partial(jax.jit, static_argnames=("stride", "padding", "dilation",
                                             "tm", "mode", "use_bf16"))
def basic_cnn_layer_fwd(x, weight, bias, gamma, beta,
                        stride=1, padding=0, dilation=1,
                        tm=None, mode="auto", use_bf16=True):
    """Conv2d -> BatchNorm2d(train, batch stats) -> LeakyReLU(0.1).  NCHW in/out.

    `bias` is accepted for API parity with the PyTorch module but unused:
    BatchNorm's per-channel mean subtraction cancels a per-channel conv bias.
    mode: "auto" | "fused" | "spill".  tm: lane-tile size (multiple of 128) or
    None to derive it from the VMEM budget.
    """
    del bias
    n, c_in, _, _ = x.shape
    c_out, _, kh, kw = weight.shape

    patches, oh, ow = _im2col_km(x.astype(jnp.float32), kh, kw,
                                 stride, padding, dilation)
    k, m = patches.shape

    mxu_dtype = jnp.bfloat16 if use_bf16 else jnp.float32
    k_pad = _round_up(k, 16 if use_bf16 else 8)   # contraction-dim sublane packing
    c8 = _round_up(c_out, 8)                      # output channels on sublanes
    m128 = _round_up(m, 128)

    # ---- M tile from a per-generation-safe VMEM budget ----------------------
    if tm is None:
        elem = 2 if use_bf16 else 4
        per_lane = 2 * elem * k_pad + 2 * 4 * c8  # dbl-buffered patch + output cols
        tm = max(128, min(_MAX_TM, (_TILE_VMEM_BUDGET // per_lane) // 128 * 128))
    assert tm % 128 == 0
    tm_eff = min(tm, m128)
    m_pad = _round_up(m128, tm_eff)
    n_tiles = m_pad // tm_eff

    if mode == "auto":
        mode = "fused" if c8 * m_pad * 4 <= _FUSE_SLAB_LIMIT else "spill"

    inv_m = 1.0 / m   # zero-padded M columns contribute 0 to stats (no conv bias)

    patches = jnp.pad(patches, ((0, k_pad - k), (0, m_pad - m))).astype(mxu_dtype)
    w2d = jnp.pad(weight.reshape(c_out, k).astype(jnp.float32),
                  ((0, c8 - c_out), (0, k_pad - k))).astype(mxu_dtype)
    g_col = jnp.pad(gamma.astype(jnp.float32).reshape(c_out, 1),
                    ((0, c8 - c_out), (0, 0)))
    b_col = jnp.pad(beta.astype(jnp.float32).reshape(c_out, 1),
                    ((0, c8 - c_out), (0, 0)))

    if mode == "fused":
        g2d = jnp.broadcast_to(g_col, (c8, 128))
        b2d = jnp.broadcast_to(b_col, (c8, 128))
        last = n_tiles - 1
        out_pad = pl.pallas_call(
            functools.partial(_fused_kernel, inv_m=inv_m),
            out_shape=jax.ShapeDtypeStruct((c8, m_pad), jnp.float32),
            grid_spec=pltpu.PrefetchScalarGridSpec(
                num_scalar_prefetch=0,
                grid=(2, n_tiles),
                in_specs=[
                    # phase 0 streams patch tiles; phase 1 pins the last tile's
                    # block index so no extra patch DMA is issued.
                    pl.BlockSpec((k_pad, tm_eff),
                                 lambda p, i: (0, i * (1 - p) + last * p)),
                    pl.BlockSpec((c8, k_pad), lambda p, i: (0, 0)),
                    pl.BlockSpec((c8, 128), lambda p, i: (0, 0)),
                    pl.BlockSpec((c8, 128), lambda p, i: (0, 0)),
                ],
                # stays at block 0 through phase 0 (never written back before
                # phase 1 overwrites it), then streams lane-dense tiles.
                out_specs=pl.BlockSpec((c8, tm_eff), lambda p, i: (0, i * p)),
                scratch_shapes=[
                    pltpu.VMEM((c8, m_pad), jnp.float32),   # resident conv slab
                    pltpu.VMEM((c8, 128), jnp.float32),     # sum accumulator
                    pltpu.VMEM((c8, 128), jnp.float32),     # sum-of-squares
                    pltpu.VMEM((c8, 128), jnp.float32),     # BN scale
                    pltpu.VMEM((c8, 128), jnp.float32),     # BN shift
                ]),
            compiler_params=pltpu.CompilerParams(
                dimension_semantics=("arbitrary", "arbitrary"),
                vmem_limit_bytes=_VMEM_LIMIT_BYTES),
        )(patches, w2d, g2d, b2d)
    else:
        stats_sds = jax.ShapeDtypeStruct((c8, 128), jnp.float32)
        conv_out, sum_out, sq_out = pl.pallas_call(
            _conv_stats_kernel,
            out_shape=(jax.ShapeDtypeStruct((c8, m_pad), jnp.float32),
                       stats_sds, stats_sds),
            grid_spec=pltpu.PrefetchScalarGridSpec(
                num_scalar_prefetch=0,
                grid=(n_tiles,),
                in_specs=[pl.BlockSpec((k_pad, tm_eff), lambda i: (0, i)),
                          pl.BlockSpec((c8, k_pad), lambda i: (0, 0))],
                out_specs=(pl.BlockSpec((c8, tm_eff), lambda i: (0, i)),
                           pl.BlockSpec((c8, 128), lambda i: (0, 0)),
                           pl.BlockSpec((c8, 128), lambda i: (0, 0)))),
            compiler_params=pltpu.CompilerParams(
                dimension_semantics=("arbitrary",),
                vmem_limit_bytes=_VMEM_LIMIT_BYTES),
        )(patches, w2d)

        # BN coefficients: finish the cross-lane reduce + rsqrt once on 4 KiB
        # arrays in XLA (hoisted out of the per-tile kernel body).
        mean = jnp.sum(sum_out, axis=1, keepdims=True) * inv_m
        var = jnp.maximum(jnp.sum(sq_out, axis=1, keepdims=True) * inv_m
                          - mean * mean, 0.0)
        inv_std = jax.lax.rsqrt(var + BN_EPS)
        scale_col = g_col * inv_std
        scale = jnp.broadcast_to(scale_col, (c8, 128))
        shift = jnp.broadcast_to(b_col - mean * scale_col, (c8, 128))

        # Pass 2 is embarrassingly parallel over M tiles ("parallel" -> megacore
        # sharding on v7x); split a single tile in two so both cores get work.
        tm2, n2 = tm_eff, n_tiles
        if n2 == 1 and tm_eff % 256 == 0:
            tm2, n2 = tm_eff // 2, 2

        out_pad = pl.pallas_call(
            _norm_kernel,
            out_shape=jax.ShapeDtypeStruct((c8, m_pad), jnp.float32),
            grid_spec=pltpu.PrefetchScalarGridSpec(
                num_scalar_prefetch=0,
                grid=(n2,),
                in_specs=[pl.BlockSpec((c8, tm2), lambda i: (0, i)),
                          pl.BlockSpec((c8, 128), lambda i: (0, 0)),
                          pl.BlockSpec((c8, 128), lambda i: (0, 0))],
                out_specs=pl.BlockSpec((c8, tm2), lambda i: (0, i))),
            compiler_params=pltpu.CompilerParams(
                dimension_semantics=("parallel",),
                vmem_limit_bytes=_VMEM_LIMIT_BYTES),
        )(conv_out, scale, shift)

    # (C_out, M) -> (C_out, N, OH, OW) -> NCHW (leading-axis permute only).
    return out_pad[:c_out, :m].reshape(c_out, n, oh, ow).transpose(1, 0, 2, 3)


# ----------------------------------------------------------------------------
# Pure-JAX reference (matches the PyTorch module's forward)
# ----------------------------------------------------------------------------
def _reference(x, weight, bias, gamma, beta, stride, padding, dilation):
    conv = jax.lax.conv_general_dilated(
        x.astype(jnp.float32), weight.astype(jnp.float32),
        window_strides=(stride, stride),
        padding=[(padding, padding), (padding, padding)],
        rhs_dilation=(dilation, dilation),
        dimension_numbers=("NCHW", "OIHW", "NCHW"),
    ) + bias.reshape(1, -1, 1, 1)
    mean = jnp.mean(conv, axis=(0, 2, 3), keepdims=True)
    var = jnp.mean((conv - mean) ** 2, axis=(0, 2, 3), keepdims=True)
    y = (conv - mean) * jax.lax.rsqrt(var + BN_EPS)
    y = y * gamma.reshape(1, -1, 1, 1) + beta.reshape(1, -1, 1, 1)
    return jnp.where(y >= 0, y, LEAKY_SLOPE * y)


if __name__ == "__main__":
    key = jax.random.PRNGKey(0)
    kx, kw_, kb, kg, kbe = jax.random.split(key, 5)

    # Conv2d(4 -> 8, k=3, stride=1, pad=1) on a (2, 4, 16, 16) input.
    N, C_IN, H, W = 2, 4, 16, 16
    C_OUT, KSIZE = 8, 3

    x = jax.random.normal(kx, (N, C_IN, H, W), dtype=jnp.float32)
    weight = jax.random.normal(kw_, (C_OUT, C_IN, KSIZE, KSIZE), dtype=jnp.float32) * 0.1
    bias = jax.random.normal(kb, (C_OUT,), dtype=jnp.float32) * 0.1
    gamma = 1.0 + 0.1 * jax.random.normal(kg, (C_OUT,), dtype=jnp.float32)
    beta = 0.1 * jax.random.normal(kbe, (C_OUT,), dtype=jnp.float32)

    ref = _reference(x, weight, bias, gamma, beta, 1, 1, 1)

    # Fused path: auto tile (single tile) and tm=128 (4 phase-0 tiles, exercises
    # the resident conv slab + lane-wise stat accumulation across tiles).
    for tile_m in (None, 128):
        out = basic_cnn_layer_fwd(x, weight, bias, gamma, beta,
                                  stride=1, padding=1, dilation=1,
                                  tm=tile_m, mode="fused")
        out = jax.block_until_ready(out)
        assert out.shape == ref.shape == (N, C_OUT, H, W)
        err = float(jnp.max(jnp.abs(out - ref)))
        assert jnp.allclose(out, ref, atol=2e-2, rtol=2e-2), err

    # Spill fallback path: auto tile (single stats tile -> pass-2 tile split)
    # and tm=128 (4-step accumulation + 4-tile parallel normalize).
    for tile_m in (None, 128):
        out = basic_cnn_layer_fwd(x, weight, bias, gamma, beta,
                                  stride=1, padding=1, dilation=1,
                                  tm=tile_m, mode="spill")
        out = jax.block_until_ready(out)
        err = float(jnp.max(jnp.abs(out - ref)))
        assert jnp.allclose(out, ref, atol=2e-2, rtol=2e-2), err

    # f32 MXU operands (tighter parity path).
    out = jax.block_until_ready(
        basic_cnn_layer_fwd(x, weight, bias, gamma, beta,
                            stride=1, padding=1, dilation=1, use_bf16=False))
    assert jnp.allclose(out, ref, atol=2e-2, rtol=2e-2)

    # Second geometry: stride 2, no padding, C_out=6 (exercises channel-sublane
    # and M-lane zero padding inside the kernel).
    C_OUT2 = 6
    w2 = jax.random.normal(kw_, (C_OUT2, C_IN, KSIZE, KSIZE), dtype=jnp.float32) * 0.1
    b2 = jnp.zeros((C_OUT2,), jnp.float32)
    g2 = jnp.ones((C_OUT2,), jnp.float32)
    be2 = jnp.zeros((C_OUT2,), jnp.float32)
    out2 = jax.block_until_ready(
        basic_cnn_layer_fwd(x, w2, b2, g2, be2, stride=2, padding=0, dilation=1))
    ref2 = _reference(x, w2, b2, g2, be2, 2, 0, 1)
    assert out2.shape == ref2.shape == (N, C_OUT2, 7, 7)
    assert jnp.allclose(out2, ref2, atol=2e-2, rtol=2e-2)

    print("KERNEL_OK")
</pallas_src>

<mosaic_0001>
module attributes {stable_mosaic.version = 11 : i64} {
  func.func @_fused_kernel(%arg0: i32, %arg1: i32, %arg2: memref<48x512xbf16, #tpu.memory_space<vmem>>, %arg3: memref<8x48xbf16, #tpu.memory_space<vmem>>, %arg4: memref<8x128xf32, #tpu.memory_space<vmem>>, %arg5: memref<8x128xf32, #tpu.memory_space<vmem>>, %arg6: memref<8x512xf32, #tpu.memory_space<vmem>>, %arg7: memref<8x512xf32, #tpu.memory_space<vmem>>, %arg8: memref<8x128xf32, #tpu.memory_space<vmem>>, %arg9: memref<8x128xf32, #tpu.memory_space<vmem>>, %arg10: memref<8x128xf32, #tpu.memory_space<vmem>>, %arg11: memref<8x128xf32, #tpu.memory_space<vmem>>) attributes {dimension_semantics = [#tpu.dimension_semantics<arbitrary>, #tpu.dimension_semantics<arbitrary>], iteration_bounds = array<i64: 2, 1>, scalar_prefetch = 0 : i64, scratch_operands = 5 : i64, tpu.core_type = #tpu.core_type<tc>, window_params = [{transform_indices = @transform_0, window_bounds = array<i64: 48, 512>}, {pipeline_mode = #tpu.pipeline_mode<synchronous>, transform_indices = @transform_1, window_bounds = array<i64: 8, 48>}, {pipeline_mode = #tpu.pipeline_mode<synchronous>, transform_indices = @transform_2, window_bounds = array<i64: 8, 128>}, {pipeline_mode = #tpu.pipeline_mode<synchronous>, transform_indices = @transform_3, window_bounds = array<i64: 8, 128>}, {transform_indices = @transform_4, window_bounds = array<i64: 8, 512>}]} {
    %c0_i32 = arith.constant 0 : i32
    %0 = arith.cmpi eq, %arg0, %c0_i32 : i32
    %1 = arith.extui %0 : i1 to i32
    %c0_i32_0 = arith.constant 0 : i32
    %2 = arith.cmpi ne, %1, %c0_i32_0 : i32
    scf.if %2 {
      %c0_i32_2 = arith.constant 0 : i32
      %6 = arith.cmpi eq, %arg1, %c0_i32_2 : i32
      %7 = arith.extui %6 : i1 to i32
      %c0_i32_3 = arith.constant 0 : i32
      %8 = arith.cmpi ne, %7, %c0_i32_3 : i32
      scf.if %8 {
        %cst_16 = arith.constant 0.000000e+00 : f32
        %36 = vector.broadcast %cst_16 : f32 to vector<8x128xf32>
        %c0_17 = arith.constant 0 : index
        %c0_18 = arith.constant 0 : index
        %37 = vector.load %arg8[%c0_17, %c0_18] : memref<8x128xf32, #tpu.memory_space<vmem>>, vector<8x128xf32>
        tpu.vector_store %arg8[%c0_17, %c0_18], %36 {strides = array<i32>} : memref<8x128xf32, #tpu.memory_space<vmem>>, vector<8x128xf32>,
        %cst_19 = arith.constant 0.000000e+00 : f32
        %38 = vector.broadcast %cst_19 : f32 to vector<8x128xf32>
        %c0_20 = arith.constant 0 : index
        %c0_21 = arith.constant 0 : index
        %39 = vector.load %arg9[%c0_20, %c0_21] : memref<8x128xf32, #tpu.memory_space<vmem>>, vector<8x128xf32>
        tpu.vector_store %arg9[%c0_20, %c0_21], %38 {strides = array<i32>} : memref<8x128xf32, #tpu.memory_space<vmem>>, vector<8x128xf32>,
      } else {
      }
      %c0 = arith.constant 0 : index
      %c0_4 = arith.constant 0 : index
      %9 = vector.load %arg3[%c0, %c0_4] : memref<8x48xbf16, #tpu.memory_space<vmem>>, vector<8x48xbf16>
      %c0_5 = arith.constant 0 : index
      %c0_6 = arith.constant 0 : index
      %10 = vector.load %arg2[%c0_5, %c0_6] : memref<48x512xbf16, #tpu.memory_space<vmem>>, vector<48x512xbf16>
      %cst = arith.constant dense<0.000000e+00> : vector<8x512xf32>
      %11 = tpu.matmul %9, %10, %cst {dimension_numbers = #tpu.dot_dimension_numbers<[1], [0], [0], [1], [0, 0, 1, 1], [], []>} : vector<8x48xbf16>, vector<48x512xbf16>, vector<8x512xf32> -> vector<8x512xf32>
      %c512_i32 = arith.constant 512 : i32
      %12 = arith.muli %arg1, %c512_i32 : i32
      %13 = tpu.assume_multiple %12, 128 : i32
      %c0_7 = arith.constant 0 : index
      %14 = arith.index_cast %13 : i32 to index
      %15 = vector.load %arg7[%c0_7, %14] : memref<8x512xf32, #tpu.memory_space<vmem>>, vector<8x512xf32>
      tpu.vector_store %arg7[%c0_7, %14], %11 {strides = array<i32>} : memref<8x512xf32, #tpu.memory_space<vmem>>, vector<8x512xf32>,
      %c0_8 = arith.constant 0 : index
      %c0_9 = arith.constant 0 : index
      %16 = vector.load %arg8[%c0_8, %c0_9] : memref<8x128xf32, #tpu.memory_space<vmem>>, vector<8x128xf32>
      %c0_10 = arith.constant 0 : index
      %c0_11 = arith.constant 0 : index
      %17 = vector.load %arg9[%c0_10, %c0_11] : memref<8x128xf32, #tpu.memory_space<vmem>>, vector<8x128xf32>
      %18 = vector.extract_strided_slice %11 {offsets = [0, 0], sizes = [8, 128], strides = [1, 1]} : vector<8x512xf32> to vector<8x128xf32>
      %19 = arith.addf %16, %18 : vector<8x128xf32>
      %20 = arith.mulf %18, %18 : vector<8x128xf32>
      %21 = arith.addf %17, %20 : vector<8x128xf32>
      %22 = vector.extract_strided_slice %11 {offsets = [0, 128], sizes = [8, 128], strides = [1, 1]} : vector<8x512xf32> to vector<8x128xf32>
      %23 = arith.addf %19, %22 : vector<8x128xf32>
      %24 = arith.mulf %22, %22 : vector<8x128xf32>
      %25 = arith.addf %21, %24 : vector<8x128xf32>
      %26 = vector.extract_strided_slice %11 {offsets = [0, 256], sizes = [8, 128], strides = [1, 1]} : vector<8x512xf32> to vector<8x128xf32>
      %27 = arith.addf %23, %26 : vector<8x128xf32>
      %28 = arith.mulf %26, %26 : vector<8x128xf32>
      %29 = arith.addf %25, %28 : vector<8x128xf32>
      %30 = vector.extract_strided_slice %11 {offsets = [0, 384], sizes = [8, 128], strides = [1, 1]} : vector<8x512xf32> to vector<8x128xf32>
      %31 = arith.addf %27, %30 : vector<8x128xf32>
      %32 = arith.mulf %30, %30 : vector<8x128xf32>
      %33 = arith.addf %29, %32 : vector<8x128xf32>
      %c0_12 = arith.constant 0 : index
      %c0_13 = arith.constant 0 : index
      %34 = vector.load %arg8[%c0_12, %c0_13] : memref<8x128xf32, #tpu.memory_space<vmem>>, vector<8x128xf32>
      tpu.vector_store %arg8[%c0_12, %c0_13], %31 {strides = array<i32>} : memref<8x128xf32, #tpu.memory_space<vmem>>, vector<8x128xf32>,
      %c0_14 = arith.constant 0 : index
      %c0_15 = arith.constant 0 : index
      %35 = vector.load %arg9[%c0_14, %c0_15] : memref<8x128xf32, #tpu.memory_space<vmem>>, vector<8x128xf32>
      tpu.vector_store %arg9[%c0_14, %c0_15], %33 {strides = array<i32>} : memref<8x128xf32, #tpu.memory_space<vmem>>, vector<8x128xf32>,
    } else {
    }
    %c1_i32 = arith.constant 1 : i32
    %3 = arith.cmpi eq, %arg0, %c1_i32 : i32
    %4 = arith.extui %3 : i1 to i32
    %c0_i32_1 = arith.constant 0 : i32
    %5 = arith.cmpi ne, %4, %c0_i32_1 : i32
    scf.if %5 {
      %c0_i32_2 = arith.constant 0 : i32
      %6 = arith.cmpi eq, %arg1, %c0_i32_2 : i32
      %7 = arith.extui %6 : i1 to i32
      %c0_i32_3 = arith.constant 0 : i32
      %8 = arith.cmpi ne, %7, %c0_i32_3 : i32
      scf.if %8 {
        %c0_11 = arith.constant 0 : index
        %c0_12 = arith.constant 0 : index
        %27 = vector.load %arg8[%c0_11, %c0_12] : memref<8x128xf32, #tpu.memory_space<vmem>>, vector<8x128xf32>
        %cst_13 = arith.constant dense<0.000000e+00> : vector<8xf32>
        %28 = vector.multi_reduction <add>, %27, %cst_13 [1] : vector<8x128xf32> to vector<8xf32>
        %29 = vector.shape_cast %28 : vector<8xf32> to vector<8x1xf32>
        %c0_14 = arith.constant 0 : index
        %c0_15 = arith.constant 0 : index
        %30 = vector.load %arg9[%c0_14, %c0_15] : memref<8x128xf32, #tpu.memory_space<vmem>>, vector<8x128xf32>
        %cst_16 = arith.constant dense<0.000000e+00> : vector<8xf32>
        %31 = vector.multi_reduction <add>, %30, %cst_16 [1] : vector<8x128xf32> to vector<8xf32>
        %32 = vector.shape_cast %31 : vector<8xf32> to vector<8x1xf32>
        %cst_17 = arith.constant 0.001953125 : f32
        %33 = vector.broadcast %cst_17 : f32 to vector<8x1xf32>
        %34 = arith.mulf %29, %33 : vector<8x1xf32>
        %cst_18 = arith.constant 0.001953125 : f32
        %35 = vector.broadcast %cst_18 : f32 to vector<8x1xf32>
        %36 = arith.mulf %32, %35 : vector<8x1xf32>
        %37 = arith.mulf %34, %34 : vector<8x1xf32>
        %38 = arith.subf %36, %37 : vector<8x1xf32>
        %cst_19 = arith.constant 0.000000e+00 : f32
        %39 = vector.broadcast %cst_19 : f32 to vector<8x1xf32>
        %40 = arith.maximumf %38, %39 : vector<8x1xf32>
        %cst_20 = arith.constant 9.99999974E-6 : f32
        %41 = vector.broadcast %cst_20 : f32 to vector<8x1xf32>
        %42 = arith.addf %40, %41 : vector<8x1xf32>
        %43 = math.rsqrt %42 : vector<8x1xf32>
        %c0_21 = arith.constant 0 : index
        %c0_22 = arith.constant 0 : index
        %44 = vector.load %arg4[%c0_21, %c0_22] : memref<8x128xf32, #tpu.memory_space<vmem>>, vector<8x128xf32>
        %45 = vector.extract_strided_slice %44 {offsets = [0, 0], sizes = [8, 1], strides = [1, 1]} : vector<8x128xf32> to vector<8x1xf32>
        %46 = arith.mulf %45, %43 : vector<8x1xf32>
        %c0_23 = arith.constant 0 : index
        %c0_24 = arith.constant 0 : index
        %47 = vector.load %arg5[%c0_23, %c0_24] : memref<8x128xf32, #tpu.memory_space<vmem>>, vector<8x128xf32>
        %48 = vector.extract_strided_slice %47 {offsets = [0, 0], sizes = [8, 1], strides = [1, 1]} : vector<8x128xf32> to vector<8x1xf32>
        %49 = arith.mulf %34, %46 : vector<8x1xf32>
        %50 = arith.subf %48, %49 : vector<8x1xf32>
        %51 = vector.shape_cast %46 : vector<8x1xf32> to vector<8x1xf32>
        %52 = vector.broadcast %51 : vector<8x1xf32> to vector<8x128xf32>
        %c0_25 = arith.constant 0 : index
        %c0_26 = arith.constant 0 : index
        %53 = vector.load %arg10[%c0_25, %c0_26] : memref<8x128xf32, #tpu.memory_space<vmem>>, vector<8x128xf32>
        tpu.vector_store %arg10[%c0_25, %c0_26], %52 {strides = array<i32>} : memref<8x128xf32, #tpu.memory_space<vmem>>, vector<8x128xf32>,
        %54 = vector.shape_cast %50 : vector<8x1xf32> to vector<8x1xf32>
        %55 = vector.broadcast %54 : vector<8x1xf32> to vector<8x128xf32>
        %c0_27 = arith.constant 0 : index
        %c0_28 = arith.constant 0 : index
        %56 = vector.load %arg11[%c0_27, %c0_28] : memref<8x128xf32, #tpu.memory_space<vmem>>, vector<8x128xf32>
        tpu.vector_store %arg11[%c0_27, %c0_28], %55 {strides = array<i32>} : memref<8x128xf32, #tpu.memory_space<vmem>>, vector<8x128xf32>,
      } else {
      }
      %c512_i32 = arith.constant 512 : i32
      %9 = arith.muli %arg1, %c512_i32 : i32
      %10 = tpu.assume_multiple %9, 128 : i32
      %c0 = arith.constant 0 : index
      %11 = arith.index_cast %10 : i32 to index
      %12 = vector.load %arg7[%c0, %11] : memref<8x512xf32, #tpu.memory_space<vmem>>, vector<8x512xf32>
      %c0_4 = arith.constant 0 : index
      %c0_5 = arith.constant 0 : index
      %13 = vector.load %arg10[%c0_4, %c0_5] : memref<8x128xf32, #tpu.memory_space<vmem>>, vector<8x128xf32>
      %14 = vector.extract_strided_slice %13 {offsets = [0, 0], sizes = [8, 1], strides = [1, 1]} : vector<8x128xf32> to vector<8x1xf32>
      %15 = vector.broadcast %14 : vector<8x1xf32> to vector<8x512xf32>
      %16 = arith.mulf %12, %15 : vector<8x512xf32>
      %c0_6 = arith.constant 0 : index
      %c0_7 = arith.constant 0 : index
      %17 = vector.load %arg11[%c0_6, %c0_7] : memref<8x128xf32, #tpu.memory_space<vmem>>, vector<8x128xf32>
      %18 = vector.extract_strided_slice %17 {offsets = [0, 0], sizes = [8, 1], strides = [1, 1]} : vector<8x128xf32> to vector<8x1xf32>
      %19 = vector.broadcast %18 : vector<8x1xf32> to vector<8x512xf32>
      %20 = arith.addf %16, %19 : vector<8x512xf32>
      %cst = arith.constant 0.000000e+00 : f32
      %21 = vector.broadcast %cst : f32 to vector<8x512xf32>
      %22 = arith.cmpf oge, %20, %21 : vector<8x512xf32>
      %cst_8 = arith.constant 1.000000e-01 : f32
      %23 = vector.broadcast %cst_8 : f32 to vector<8x512xf32>
      %24 = arith.mulf %23, %20 : vector<8x512xf32>
      %25 = arith.select %22, %20, %24 : vector<8x512xi1>, vector<8x512xf32>
      %c0_9 = arith.constant 0 : index
      %c0_10 = arith.constant 0 : index
      %26 = vector.load %arg6[%c0_9, %c0_10] : memref<8x512xf32, #tpu.memory_space<vmem>>, vector<8x512xf32>
      tpu.vector_store %arg6[%c0_9, %c0_10], %25 {strides = array<i32>} : memref<8x512xf32, #tpu.memory_space<vmem>>, vector<8x512xf32>,
    } else {
    }
    return
  }
  func.func @transform_0(%arg0: i32, %arg1: i32) -> (i32, i32) {
    %c1_i32 = arith.constant 1 : i32
    %0 = arith.subi %c1_i32, %arg0 : i32
    %1 = arith.muli %arg1, %0 : i32
    %c0_i32 = arith.constant 0 : i32
    %2 = arith.muli %c0_i32, %arg0 : i32
    %3 = arith.addi %1, %2 : i32
    %c0_i32_0 = arith.constant 0 : i32
    %c0_i32_1 = arith.constant 0 : i32
    return %c0_i32_0, %3 : i32, i32
  }
  func.func @transform_1(%arg0: i32, %arg1: i32) -> (i32, i32) {
    %c0_i32 = arith.constant 0 : i32
    %c0_i32_0 = arith.constant 0 : i32
    %c0_i32_1 = arith.constant 0 : i32
    return %c0_i32, %c0_i32_0 : i32, i32
  }
  func.func @transform_2(%arg0: i32, %arg1: i32) -> (i32, i32) {
    %c0_i32 = arith.constant 0 : i32
    %c0_i32_0 = arith.constant 0 : i32
    %c0_i32_1 = arith.constant 0 : i32
    return %c0_i32, %c0_i32_0 : i32, i32
  }
  func.func @transform_3(%arg0: i32, %arg1: i32) -> (i32, i32) {
    %c0_i32 = arith.constant 0 : i32
    %c0_i32_0 = arith.constant 0 : i32
    %c0_i32_1 = arith.constant 0 : i32
    return %c0_i32, %c0_i32_0 : i32, i32
  }
  func.func @transform_4(%arg0: i32, %arg1: i32) -> (i32, i32) {
    %0 = arith.muli %arg1, %arg0 : i32
    %c0_i32 = arith.constant 0 : i32
    %c0_i32_0 = arith.constant 0 : i32
    return %c0_i32, %0 : i32, i32
  }
}

</mosaic_0001>

<llo_original>
// kernel: basic_cnn_layer_fwd.1
$region0: #{basic_cnn_layer_fwd.1}
  #allocation0 [shape = 'u32[]', space=smem, size = 0x4, offset = 0x4, fixed_abs, tag = 'smem constant byte address 0x4 - core index']
  #allocation1 [shape = 'u32[72,128]{1,0:T(1,128)}', space=vmem, size = 0x9000, scoped, tag = 'internal scratch']
  #allocation2 [shape = 'f32[8,512]{1,0:T(8,128)}', space=vmem, size = 0x4000, scoped, tag = 'scratch operand']
  #allocation3 [shape = 'f32[8,128]{1,0:T(8,128)}', space=vmem, size = 0x1000, scoped, tag = 'scratch operand']
  #allocation4 [shape = 'f32[8,128]{1,0:T(8,128)}', space=vmem, size = 0x1000, scoped, tag = 'scratch operand']
  #allocation5 [shape = 'f32[8,128]{1,0:T(8,128)}', space=vmem, size = 0x1000, scoped, tag = 'scratch operand']
  #allocation6 [shape = 'f32[8,128]{1,0:T(8,128)}', space=vmem, size = 0x1000, scoped, tag = 'scratch operand']
  %s0 = inlined_call_operand.vmem [shape: bf16[48,512], index: 0, kind: input, shape index: {}]
  %s1 = inlined_call_operand.vmem [shape: bf16[8,48], index: 1, kind: input, shape index: {}]
  %s2 = inlined_call_operand.vmem [shape: f32[8,128], index: 2, kind: input, shape index: {}]
  %s3 = inlined_call_operand.vmem [shape: f32[8,128], index: 3, kind: input, shape index: {}]
  %s4 = inlined_call_operand.vmem [shape: f32[8,512], index: 4, kind: output, shape index: {}]
  %s5 = sld [smem:[#allocation0]]
  $region65: #{basic_cnn_layer_fwd.1} parent=0
    _
  %s7 = ssub.s32 1, %s5
  %s8 = scalar_select 0, %s7, %s5
  loop: start=0, step=1, limit=4
  $region2: #{basic_cnn_layer_fwd.1} parent=0 // loop_pre_header
    _
  $region3: #{basic_cnn_layer_fwd.1} parent=0 // loop_header
    %s10 = sphi 0, %s14
    %p11 = scmp.ge.s32.totalorder %s10, 4
    %s17 = sphi 0, %s29
    %s18 = sphi 0, %s25
    %s19 = sphi 0, %s17
    %s20 = sphi 0, %s18
    %s21 = sphi 0, %s19
    %s22 = sphi 0, %s20
    %s36 = sphi 0, %s38
    %s39 = sphi 0, %s36
    %s40 = sphi 0, %s39
    %s56 = sphi 0, %s40
    %s60 = sphi 0, %s60
    %s62 = sphi 0, %s60
    %s63 = sphi 0, %s62
    %s77 = sphi 0, %s63
    %s81 = sphi 0, %s81
    %s83 = sphi 0, %s81
    %s84 = sphi 0, %s83
    %s98 = sphi 0, %s84
    %s102 = sphi 0, %s102
    %s104 = sphi 0, %s102
    %s105 = sphi 0, %s104
    %s119 = sphi 0, %s105
    %s127 = sphi 0, %s129
    %s130 = sphi 0, %s127
    %s131 = sphi 0, %s130
    %s147 = sphi 0, %s131
  $region4: #{basic_cnn_layer_fwd.1} parent=0 // loop_header_branch
    %13 = sbr.rel (%p11) target = $region8
  $region5: #{basic_cnn_layer_fwd.1} parent=0 // loop_body
    %s15 = ssub.s32 %s10, 1
    %s16 = ssub.s32 %s10, 2
    %s23 = sadd.s32 1, %s18
    %p24 = scmp.ge.s32.totalorder %s23, 1
    %s25 = scalar_select %p24, 0, %s23
    %s26 = sadd.s32 1, %s17
    %s27 = scalar_select %p24, %s26, %s17
    %p28 = scmp.ge.s32.totalorder %s27, 2
    %s29 = scalar_select %p28, 0, %s27
    %s30 = ssub.s32 1, %s17
    %s31 = smul.u32 %s18, %s30
    %s32 = ssub.s32 1, %s29
    %s33 = smul.u32 %s25, %s32
    %s34 = ssub.s32 %s31, %s33
    %p35 = scmp.eq.s32.totalorder %s34, 0
    %s37 = sadd.s32 %s36, 1
    %s38 = scalar_select %p35, %s36, %s37
    %p41 = pneg %p35
    %p42 = scmp.eq.s32.totalorder %s10, 1
    %p43 = por %p41, %p42
    %p44 = scmp.ne.s32.totalorder %s36, %s39
    %p45 = scmp.eq.s32.totalorder %s10, 0
    %p46 = por %p44, %p45
    %p47 = scmp.ne.s32.totalorder %s36, %s39
    %p48 = scmp.eq.s32.totalorder %s15, 1
    %p49 = por %p47, %p48
    %p50 = scmp.ne.s32.totalorder %s39, %s40
    %p51 = scmp.eq.s32.totalorder %s15, 0
    %p52 = por %p50, %p51
    %p53 = scmp.ne.s32.totalorder %s39, %s40
    %p54 = scmp.eq.s32.totalorder %s16, 1
    %p55 = por %p53, %p54
    %p57 = scmp.ne.s32.totalorder %s40, %s56
    %p58 = scmp.eq.s32.totalorder %s16, 0
    %p59 = por %p57, %p58
    %s61 = sadd.s32 %s60, 1
    %p64 = scmp.eq.s32.totalorder %s10, 1
    %p65 = scmp.ne.s32.totalorder %s60, %s62
    %p66 = scmp.eq.s32.totalorder %s10, 0
    %p67 = por %p65, %p66
    %p68 = scmp.ne.s32.totalorder %s60, %s62
    %p69 = scmp.eq.s32.totalorder %s15, 1
    %p70 = por %p68, %p69
    %p71 = scmp.ne.s32.totalorder %s62, %s63
    %p72 = scmp.eq.s32.totalorder %s15, 0
    %p73 = por %p71, %p72
    %p74 = scmp.ne.s32.totalorder %s62, %s63
    %p75 = scmp.eq.s32.totalorder %s16, 1
    %p76 = por %p74, %p75
    %p78 = scmp.ne.s32.totalorder %s63, %s77
    %p79 = scmp.eq.s32.totalorder %s16, 0
    %p80 = por %p78, %p79
    %s82 = sadd.s32 %s81, 1
    %p85 = scmp.eq.s32.totalorder %s10, 1
    %p86 = scmp.ne.s32.totalorder %s81, %s83
    %p87 = scmp.eq.s32.totalorder %s10, 0
    %p88 = por %p86, %p87
    %p89 = scmp.ne.s32.totalorder %s81, %s83
    %p90 = scmp.eq.s32.totalorder %s15, 1
    %p91 = por %p89, %p90
    %p92 = scmp.ne.s32.totalorder %s83, %s84
    %p93 = scmp.eq.s32.totalorder %s15, 0
    %p94 = por %p92, %p93
    %p95 = scmp.ne.s32.totalorder %s83, %s84
    %p96 = scmp.eq.s32.totalorder %s16, 1
    %p97 = por %p95, %p96
    %p99 = scmp.ne.s32.totalorder %s84, %s98
    %p100 = scmp.eq.s32.totalorder %s16, 0
    %p101 = por %p99, %p100
    %s103 = sadd.s32 %s102, 1
    %p106 = scmp.eq.s32.totalorder %s10, 1
    %p107 = scmp.ne.s32.totalorder %s102, %s104
    %p108 = scmp.eq.s32.totalorder %s10, 0
    %p109 = por %p107, %p108
    %p110 = scmp.ne.s32.totalorder %s102, %s104
    %p111 = scmp.eq.s32.totalorder %s15, 1
    %p112 = por %p110, %p111
    %p113 = scmp.ne.s32.totalorder %s104, %s105
    %p114 = scmp.eq.s32.totalorder %s15, 0
    %p115 = por %p113, %p114
    %p116 = scmp.ne.s32.totalorder %s104, %s105
    %p117 = scmp.eq.s32.totalorder %s16, 1
    %p118 = por %p116, %p117
    %p120 = scmp.ne.s32.totalorder %s105, %s119
    %p121 = scmp.eq.s32.totalorder %s16, 0
    %p122 = por %p120, %p121
    %s123 = smul.u32 %s18, %s17
    %s124 = smul.u32 %s25, %s29
    %s125 = ssub.s32 %s123, %s124
    %p126 = scmp.eq.s32.totalorder %s125, 0
    %s128 = sadd.s32 %s127, 1
    %s129 = scalar_select %p126, %s127, %s128
    %p132 = pneg %p126
    %p133 = scmp.eq.s32.totalorder %s10, 1
    %p134 = por %p132, %p133
    %p135 = scmp.ne.s32.totalorder %s127, %s130
    %p136 = scmp.eq.s32.totalorder %s10, 0
    %p137 = por %p135, %p136
    %p138 = scmp.ne.s32.totalorder %s127, %s130
    %p139 = scmp.eq.s32.totalorder %s15, 1
    %p140 = por %p138, %p139
    %p141 = scmp.ne.s32.totalorder %s130, %s131
    %p142 = scmp.eq.s32.totalorder %s15, 0
    %p143 = por %p141, %p142
    %p144 = scmp.ne.s32.totalorder %s130, %s131
    %p145 = scmp.eq.s32.totalorder %s16, 1
    %p146 = por %p144, %p145
    %p148 = scmp.ne.s32.totalorder %s131, %s147
    %p149 = scmp.eq.s32.totalorder %s16, 0
    %p150 = por %p148, %p149
    %p151 = scmp.le.s32.totalorder 1, %s10
    %p152 = scmp.lt.s32.totalorder %s10, 3
    %p153 = pnand %p151, %p152
    %p154 = pneg %p153
    // Predicated region
    $region9: #{basic_cnn_layer_fwd.1} parent=5 // pred_check
      _
    $region10: #{basic_cnn_layer_fwd.1} parent=5 // pred_check_branch
      %156 = sbr.rel (%p153) target = $region12
    $region11: #{basic_cnn_layer_fwd.1} parent=5 // pred_region
      %s157 = ssub.s32 %s10, 1
      // Predicated region
      $region13: #{basic_cnn_layer_fwd.1} parent=11 // pred_check
        %p158 = pneg %p73
      $region14: #{basic_cnn_layer_fwd.1} parent=11 // pred_check_branch
        %160 = sbr.rel (%p158) target = $region16
      $region15: #{basic_cnn_layer_fwd.1} parent=11 // pred_region
        _
      $region16: #{basic_cnn_layer_fwd.1} parent=11 // pred_fallthru
        _
      // Predicated region
      $region17: #{basic_cnn_layer_fwd.1} parent=11 // pred_check
        %p161 = pneg %p94
      $region18: #{basic_cnn_layer_fwd.1} parent=11 // pred_check_branch
        %163 = sbr.rel (%p161) target = $region20
      $region19: #{basic_cnn_layer_fwd.1} parent=11 // pred_region
        _
      $region20: #{basic_cnn_layer_fwd.1} parent=11 // pred_fallthru
        _
      // Predicated region
      $region21: #{basic_cnn_layer_fwd.1} parent=11 // pred_check
        %p164 = pneg %p115
      $region22: #{basic_cnn_layer_fwd.1} parent=11 // pred_check_branch
        %166 = sbr.rel (%p164) target = $region24
      $region23: #{basic_cnn_layer_fwd.1} parent=11 // pred_region
        _
      $region24: #{basic_cnn_layer_fwd.1} parent=11 // pred_fallthru
        _
    $region12: #{basic_cnn_layer_fwd.1} parent=5 // pred_fallthru
      _
    %p167 = scmp.lt.s32.totalorder %s10, 2
    // Predicated region
    $region25: #{basic_cnn_layer_fwd.1} parent=5 // pred_check
      %p168 = pneg %p167
    $region26: #{basic_cnn_layer_fwd.1} parent=5 // pred_check_branch
      %170 = sbr.rel (%p168) target = $region28
    $region27: #{basic_cnn_layer_fwd.1} parent=5 // pred_region
      // Predicated region
      $region29: #{basic_cnn_layer_fwd.1} parent=27 // pred_check
        %p171 = pneg %p46
      $region30: #{basic_cnn_layer_fwd.1} parent=27 // pred_check_branch
        %173 = sbr.rel (%p171) target = $region32
      $region31: #{basic_cnn_layer_fwd.1} parent=27 // pred_region
        %s174 = ssub.s32 1, %s17
        %s175 = smul.u32 %s18, %s174
        %s176 = smul.u32 4, %s175
        %p177 = scmp.lt.s32.totalorder %s176, 3
        %s178 = scalar_select %p177, %s176, 3
        %s179 = smul.addr %s178, 4
        %s180 = scalar_lea.vmem %s0, %s179
        %s181 = ssub.s32 1, %s17
        %s182 = smul.u32 %s18, %s181
        %s183 = smul.u32 4, %s182
      $region32: #{basic_cnn_layer_fwd.1} parent=27 // pred_fallthru
        _
    $region28: #{basic_cnn_layer_fwd.1} parent=5 // pred_fallthru
      _
    %p184 = scmp.le.s32.totalorder 1, %s10
    %p185 = scmp.lt.s32.totalorder %s10, 3
    %p186 = pnand %p184, %p185
    %p187 = pneg %p186
    // Predicated region
    $region33: #{basic_cnn_layer_fwd.1} parent=5 // pred_check
      _
    $region34: #{basic_cnn_layer_fwd.1} parent=5 // pred_check_branch
      %189 = sbr.rel (%p186) target = $region36
    $region35: #{basic_cnn_layer_fwd.1} parent=5 // pred_region
      %s190 = ssub.s32 %s10, 1
      %s191 = ssub.s32 1, %s19
      %s192 = smul.u32 %s20, %s191
      %s193 = smul.u32 4, %s192
      %p194 = scmp.lt.s32.totalorder %s193, 3
      %s195 = scalar_select %p194, %s193, 3
      %s196 = smul.addr %s195, 4
      %s197 = scalar_lea.vmem %s0, %s196
      %p198 = pneg %p52
      %p199 = pneg %p49
      %p200 = pneg %p73
      %p201 = pneg %p70
      %p202 = pneg %p94
      %p203 = pneg %p91
      %p204 = pneg %p115
      %p205 = pneg %p112
      %p206 = pneg %p143
      %p207 = pneg %p140
      %s208 = smul.u32 %s20, %s19
      %s209 = smul.u32 4, %s208
      %p210 = scmp.lt.s32.totalorder %s209, 3
      %s211 = scalar_select %p210, %s209, 3
      %s212 = smul.addr %s211, 8
      %s213 = scalar_lea.vmem %s4, %s212
      %s214 = ssub.s32 1, %s19
      %s215 = smul.u32 %s20, %s214
      %s216 = smul.u32 4, %s215
      %p217 = scmp.lt.s32.totalorder %s216, 3
      %s218 = scalar_select %p217, %s216, 3
      %s219 = smul.addr %s218, 4
      %s220 = scalar_lea.vmem %s0, %s219
      %s221 = ssub.s32 1, %s19
      %s222 = smul.u32 %s20, %s221
      %s223 = smul.u32 4, %s222
      %s224 = smul.u32 %s20, %s19
      %s225 = smul.u32 4, %s224
      %p226 = scmp.lt.s32.totalorder %s225, 3
      %s227 = scalar_select %p226, %s225, 3
      %s228 = smul.addr %s227, 8
      %s229 = scalar_lea.vmem %s4, %s228
      %s230 = smul.u32 %s20, %s19
      %s231 = smul.u32 4, %s230
      %p233 = scmp.eq.s32.totalorder %s19, 0
      // Predicated region
      $region37: #{basic_cnn_layer_fwd.1} parent=35 // pred_check
        %p234 = pneg %p233
      $region38: #{basic_cnn_layer_fwd.1} parent=35 // pred_check_branch
        %236 = sbr.rel (%p234) target = $region40
      $region39: #{basic_cnn_layer_fwd.1} parent=35 // pred_region
        %p237 = scmp.eq.s32.totalorder %s20, 0
        // Predicated region
        $region41: #{basic_cnn_layer_fwd.1} parent=39 // pred_check
          %p238 = pneg %p237
        $region42: #{basic_cnn_layer_fwd.1} parent=39 // pred_check_branch
          %240 = sbr.rel (%p238) target = $region44
        $region43: #{basic_cnn_layer_fwd.1} parent=39 // pred_region
          %241 = vst [vmem:[#allocation3] sm:$0xff] 0.0
          %242 = vst [vmem:[#allocation4] sm:$0xff] 0.0
        $region44: #{basic_cnn_layer_fwd.1} parent=39 // pred_fallthru
          _
        %v243 = vld [vmem:[%s1] sm:$0xf]
        %v244 = vld [vmem:[%s220] sm:$0xff]
        %v245 = vld [vmem:[%s220 + $0x8] sm:$0xff]
        %v246 = vld [vmem:[%s220 + $0x10] sm:$0xff]
        %v247 = vld [vmem:[%s220 + $0x18] sm:$0xff]
        %v248 = vld [vmem:[%s220 + $0x20] sm:$0xff]
        %v249 = vld [vmem:[%s220 + $0x28] sm:$0xff]
        %v250 = vld [vmem:[%s220 + $0x30] sm:$0xff]
        %v251 = vld [vmem:[%s220 + $0x38] sm:$0xff]
        %v252 = vld [vmem:[%s220 + $0x40] sm:$0xff]
        %v253 = vld [vmem:[%s220 + $0x48] sm:$0xff]
        %v254 = vld [vmem:[%s220 + $0x50] sm:$0xff]
        %v255 = vld [vmem:[%s220 + $0x58] sm:$0xff]
        %v268 = vunpack.c.l.b16 %v244
        %v269 = vunpack.c.h.b16 %v244
        %v270 = vunpack.c.l.b16 %v245
        %v271 = vunpack.c.h.b16 %v245
        %v272 = vunpack.c.l.b16 %v246
        %v273 = vunpack.c.h.b16 %v246
        %v274 = vunpack.c.l.b16 %v247
        %v275 = vunpack.c.h.b16 %v247
        %v276 = vunpack.c.l.b16 %v248
        %v277 = vunpack.c.h.b16 %v248
        %v278 = vunpack.c.l.b16 %v249
        %v279 = vunpack.c.h.b16 %v249
        %v280 = vunpack.c.l.b16 %v250
        %v281 = vunpack.c.h.b16 %v250
        %v282 = vunpack.c.l.b16 %v251
        %v283 = vunpack.c.h.b16 %v251
        %v284 = vunpack.c.l.b16 %v252
        %v285 = vunpack.c.h.b16 %v252
        %v286 = vunpack.c.l.b16 %v253
        %v287 = vunpack.c.h.b16 %v253
        %v288 = vunpack.c.l.b16 %v254
        %v289 = vunpack.c.h.b16 %v254
        %v290 = vunpack.c.l.b16 %v255
        %v291 = vunpack.c.h.b16 %v255
        %v292 = vpack.c.b16 %v272, %v268
        %v293 = vpack.c.b16 %v273, %v269
        %v294 = vpack.c.b16 %v274, %v270
        %v295 = vpack.c.b16 %v275, %v271
        %v296 = vpack.c.b16 %v280, %v276
        %v297 = vpack.c.b16 %v281, %v277
        %v298 = vpack.c.b16 %v282, %v278
        %v299 = vpack.c.b16 %v283, %v279
        %v300 = vpack.c.b16 %v288, %v284
        %v301 = vpack.c.b16 %v289, %v285
        %v302 = vpack.c.b16 %v290, %v286
        %v303 = vpack.c.b16 %v291, %v287
        %vm316 = vcmask 392192
        %v318 = vsel %vm316, %v243, 0
        %320 = vmatpush.bf16.msra.mxu0 0
        %321 = vmatpush.bf16.msra.mxu0 0
        %322 = vmatpush.bf16.msra.mxu0 0
        %323 = vmatpush.bf16.msra.mxu0 0
        %324 = vmatpush.bf16.msra.mxu0 0
        %325 = vmatpush.bf16.msra.mxu0 %v300
        %326 = vmatpush.bf16.msra.mxu0 %v296
        %327 = vmatpush.bf16.msra.mxu0 %v292
        %328 = vmatmul.bf16.gmra.mxu0 %v318
        %v329 = vpop.f32.mrf.mxu0
        %v330 = vadd.f32 0.0, %v329
        %v331 = vpop.f32.mrf.mxu0
        %332 = vdwg.mxu0
        %333 = vmatpush.bf16.msra.mxu0 0
        %334 = vmatpush.bf16.msra.mxu0 0
        %335 = vmatpush.bf16.msra.mxu0 0
        %336 = vmatpush.bf16.msra.mxu0 0
        %337 = vmatpush.bf16.msra.mxu0 0
        %338 = vmatpush.bf16.msra.mxu0 %v301
        %339 = vmatpush.bf16.msra.mxu0 %v297
        %340 = vmatpush.bf16.msra.mxu0 %v293
        %341 = vmatmul.bf16.gmra.mxu0 %v318
        %v342 = vpop.f32.mrf.mxu0
        %v343 = vadd.f32 0.0, %v342
        %v344 = vpop.f32.mrf.mxu0
        %345 = vdwg.mxu0
        %346 = vmatpush.bf16.msra.mxu0 0
        %347 = vmatpush.bf16.msra.mxu0 0
        %348 = vmatpush.bf16.msra.mxu0 0
        %349 = vmatpush.bf16.msra.mxu0 0
        %350 = vmatpush.bf16.msra.mxu0 0
        %351 = vmatpush.bf16.msra.mxu0 %v302
        %352 = vmatpush.bf16.msra.mxu0 %v298
        %353 = vmatpush.bf16.msra.mxu0 %v294
        %354 = vmatmul.bf16.gmra.mxu0 %v318
        %v355 = vpop.f32.mrf.mxu0
        %v356 = vadd.f32 0.0, %v355
        %v357 = vpop.f32.mrf.mxu0
        %358 = vdwg.mxu0
        %359 = vmatpush.bf16.msra.mxu0 0
        %360 = vmatpush.bf16.msra.mxu0 0
        %361 = vmatpush.bf16.msra.mxu0 0
        %362 = vmatpush.bf16.msra.mxu0 0
        %363 = vmatpush.bf16.msra.mxu0 0
        %364 = vmatpush.bf16.msra.mxu0 %v303
        %365 = vmatpush.bf16.msra.mxu0 %v299
        %366 = vmatpush.bf16.msra.mxu0 %v295
        %367 = vmatmul.bf16.gmra.mxu0 %v318
        %v368 = vpop.f32.mrf.mxu0
        %v369 = vadd.f32 0.0, %v368
        %v370 = vpop.f32.mrf.mxu0
        %371 = vdwg.mxu0
        %s372 = smul.u32 %s20, 512
        %s373 = sshra.s32 %s372, 7
        %s374 = sand.u32 %s372, 127
        %s375 = smul.addr %s373, 8
        %s376 = scalar_lea.vmem [#allocation2], %s375
        %377 = vst [vmem:[%s376] sm:$0xff] %v330
        %378 = vst [vmem:[%s376 + $0x8] sm:$0xff] %v343
        %379 = vst [vmem:[%s376 + $0x10] sm:$0xff] %v356
        %380 = vst [vmem:[%s376 + $0x18] sm:$0xff] %v369
        %v381 = vld [vmem:[#allocation3] sm:$0xff]
        %v382 = vld [vmem:[#allocation4] sm:$0xff]
        %v383 = vadd.f32 %v381, %v330
        %v384 = vmul.f32 %v330, %v330
        %v385 = vadd.f32 %v382, %v384
        %v386 = vadd.f32 %v383, %v343
        %v387 = vmul.f32 %v343, %v343
        %v388 = vadd.f32 %v385, %v387
        %v389 = vadd.f32 %v386, %v356
        %v390 = vmul.f32 %v356, %v356
        %v391 = vadd.f32 %v388, %v390
        %v392 = vadd.f32 %v389, %v369
        %v393 = vmul.f32 %v369, %v369
        %v394 = vadd.f32 %v391, %v393
        %395 = vst [vmem:[#allocation3] sm:$0xff] %v392
        %396 = vst [vmem:[#allocation4] sm:$0xff] %v394
      $region40: #{basic_cnn_layer_fwd.1} parent=35 // pred_fallthru
        _
      %p397 = scmp.eq.s32.totalorder %s19, 1
      // Predicated region
      $region45: #{basic_cnn_layer_fwd.1} parent=35 // pred_check
        %p398 = pneg %p397
      $region46: #{basic_cnn_layer_fwd.1} parent=35 // pred_check_branch
        %400 = sbr.rel (%p398) target = $region48
      $region47: #{basic_cnn_layer_fwd.1} parent=35 // pred_region
        %p401 = scmp.eq.s32.totalorder %s20, 0
        // Predicated region
        $region49: #{basic_cnn_layer_fwd.1} parent=47 // pred_check
          %p402 = pneg %p401
        $region50: #{basic_cnn_layer_fwd.1} parent=47 // pred_check_branch
          %404 = sbr.rel (%p402) target = $region52
        $region51: #{basic_cnn_layer_fwd.1} parent=47 // pred_region
          %v405 = vld [vmem:[#allocation3] sm:$0xff]
          %406 = vadd.xlane.f32.xlu0 %v405
          %v407 = vpop.xlane.xlu0 %406
          %v408 = vld [vmem:[#allocation4] sm:$0xff]
          %409 = vadd.xlane.f32.xlu0 %v408
          %v410 = vpop.xlane.xlu0 %409
          %v411 = vmul.f32 %v407, 0.001953125
          %v412 = vmul.f32 %v410, 0.001953125
          %v413 = vmul.f32 %v411, %v411
          %v414 = vsub.f32 %v412, %v413
          %v415 = vmax.f32 %v414, 0.0
          %v416 = vadd.f32 %v415, 1e-05
          %v417 = vrsqrt.pop %v416
          %v418 = vmul.f32 %v417, %v416
          %v419 = vmul.f32 %v418, %v417
          %v420 = vmul.f32 0.5, %v419
          %v421 = vsub.f32 1.5, %v420
          %v422 = vmul.f32 %v417, %v421
          %vm423 = vweird.f32 %v416
          %vm424 = vweird.f32 %v417
          %vm425 = vmor %vm423, %vm424
          %v426 = vsel %vm425, %v417, %v422
          %v427 = vld [vmem:[%s2] sm:$0xff]
          %v428 = vmul.f32 %v427, %v426
          %v429 = vld [vmem:[%s3] sm:$0xff]
          %v430 = vmul.f32 %v411, %v428
          %v431 = vsub.f32 %v429, %v430
          %433 = vset.pattern.permute.xlu0 0
          %434 = vperm.xlu0 %433, %v428
          %v435 = vpop.permute.xlu0 %434
          %437 = vst [vmem:[#allocation5] sm:$0xff] %v435
          %439 = vset.pattern.permute.xlu0 0
          %440 = vperm.xlu0 %439, %v431
          %v441 = vpop.permute.xlu0 %440
          %443 = vst [vmem:[#allocation6] sm:$0xff] %v441
        $region52: #{basic_cnn_layer_fwd.1} parent=47 // pred_fallthru
          _
        %s444 = smul.u32 %s20, 512
        %s445 = sshra.s32 %s444, 7
        %s446 = sand.u32 %s444, 127
        %s447 = smul.addr %s445, 8
        %s448 = scalar_lea.vmem [#allocation2], %s447
        %v449 = vld [vmem:[%s448] sm:$0xff]
        %v450 = vld [vmem:[%s448 + $0x8] sm:$0xff]
        %v451 = vld [vmem:[%s448 + $0x10] sm:$0xff]
        %v452 = vld [vmem:[%s448 + $0x18] sm:$0xff]
        %v453 = vld [vmem:[#allocation5] sm:$0xff]
        %455 = vset.pattern.permute.xlu0 0
        %456 = vperm.xlu0 %455, %v453
        %v457 = vpop.permute.xlu0 %456
        %v459 = vmul.f32 %v449, %v457
        %v460 = vmul.f32 %v450, %v457
        %v461 = vmul.f32 %v451, %v457
        %v462 = vmul.f32 %v452, %v457
        %v463 = vld [vmem:[#allocation6] sm:$0xff]
        %465 = vset.pattern.permute.xlu0 0
        %466 = vperm.xlu0 %465, %v463
        %v467 = vpop.permute.xlu0 %466
        %v469 = vadd.f32 %v459, %v467
        %v470 = vadd.f32 %v460, %v467
        %v471 = vadd.f32 %v461, %v467
        %v472 = vadd.f32 %v462, %v467
        %vm473 = vcmp.ge.f32.partialorder %v469, 0.0
        %vm474 = vcmp.ge.f32.partialorder %v470, 0.0
        %vm475 = vcmp.ge.f32.partialorder %v471, 0.0
        %vm476 = vcmp.ge.f32.partialorder %v472, 0.0
        %v477 = vmul.f32 %v469, 0.1
        %v478 = vmul.f32 %v470, 0.1
        %v479 = vmul.f32 %v471, 0.1
        %v480 = vmul.f32 %v472, 0.1
        %v481 = vsel %vm473, %v469, %v477
        %v482 = vsel %vm474, %v470, %v478
        %v483 = vsel %vm475, %v471, %v479
        %v484 = vsel %vm476, %v472, %v480
        %485 = vst [vmem:[%s229] sm:$0xff] %v481
        %486 = vst [vmem:[%s229 + $0x8] sm:$0xff] %v482
        %487 = vst [vmem:[%s229 + $0x10] sm:$0xff] %v483
        %488 = vst [vmem:[%s229 + $0x18] sm:$0xff] %v484
      $region48: #{basic_cnn_layer_fwd.1} parent=35 // pred_fallthru
        _
      %s489 = smul.u32 %s20, %s19
      %s490 = smul.u32 4, %s489
      %p491 = scmp.lt.s32.totalorder %s490, 3
      %s492 = scalar_select %p491, %s490, 3
      %s493 = smul.addr %s492, 8
      %s494 = scalar_lea.vmem %s4, %s493
      // Predicated region
      $region53: #{basic_cnn_layer_fwd.1} parent=35 // pred_check
        %p495 = pneg %p140
      $region54: #{basic_cnn_layer_fwd.1} parent=35 // pred_check_branch
        %497 = sbr.rel (%p495) target = $region56
      $region55: #{basic_cnn_layer_fwd.1} parent=35 // pred_region
        %s498 = smul.u32 %s20, %s19
        %s499 = smul.u32 4, %s498
      $region56: #{basic_cnn_layer_fwd.1} parent=35 // pred_fallthru
        _
    $region36: #{basic_cnn_layer_fwd.1} parent=5 // pred_fallthru
      _
    %p500 = scmp.le.s32.totalorder 2, %s10
    // Predicated region
    $region57: #{basic_cnn_layer_fwd.1} parent=5 // pred_check
      %p501 = pneg %p500
    $region58: #{basic_cnn_layer_fwd.1} parent=5 // pred_check_branch
      %503 = sbr.rel (%p501) target = $region60
    $region59: #{basic_cnn_layer_fwd.1} parent=5 // pred_region
      %s504 = ssub.s32 %s10, 2
      // Predicated region
      $region61: #{basic_cnn_layer_fwd.1} parent=59 // pred_check
        %p505 = pneg %p146
      $region62: #{basic_cnn_layer_fwd.1} parent=59 // pred_check_branch
        %507 = sbr.rel (%p505) target = $region64
      $region63: #{basic_cnn_layer_fwd.1} parent=59 // pred_region
        %s508 = smul.u32 %s22, %s21
        %s509 = smul.u32 4, %s508
        %p510 = scmp.lt.s32.totalorder %s509, 3
        %s511 = scalar_select %p510, %s509, 3
        %s512 = smul.addr %s511, 8
        %s513 = scalar_lea.vmem %s4, %s512
      $region64: #{basic_cnn_layer_fwd.1} parent=59 // pred_fallthru
        _
    $region60: #{basic_cnn_layer_fwd.1} parent=5 // pred_fallthru
      _
  $region6: #{basic_cnn_layer_fwd.1} parent=0 // loop_footer
    %s14 = sadd.s32 1, %s10
  $region7: #{basic_cnn_layer_fwd.1} parent=0 // loop_footer_branch
    %9 = sbr.rel target = $region3
  $region8: #{basic_cnn_layer_fwd.1} parent=0 // loop_exit
    _

</llo_original>
